<compile_context>
chip_gen: v7x
topology: tpu7x:2x2x1
jax: 0.10.0
libtpu: 0.0.40
codegen_flags: <defaults>
</compile_context>

<pallas_src>
import jax
import jax.numpy as jnp
from jax.experimental import pallas as pl
from jax.experimental.pallas import tpu as pltpu


def _fused_l1_kernel(ei_ref, ea_ref, t0_ref, t1_ref, mix_ref, out_ref,
                     acc_inter_ref, acc_intra_ref):
    """Per (p, r) grid step accumulates, into (8,128) f32 accumulators:
         sum(|e_inter - t0|) + sum(|mix - e_inter - t1|)
         sum(|e_intra - t0|) + sum(|mix - e_intra - t1|)
       and writes the two scalar partial sums for core-slice p on the last
       reduction step.
    """
    r = pl.program_id(1)

    @pl.when(r == 0)
    def _():
        acc_inter_ref[...] = jnp.zeros_like(acc_inter_ref)
        acc_intra_ref[...] = jnp.zeros_like(acc_intra_ref)

    # All refs are (B, rows_tile, 128) — fully dense (8,128) tiles.
    ei = ei_ref[...].astype(jnp.float32)
    ea = ea_ref[...].astype(jnp.float32)
    t0 = t0_ref[...].astype(jnp.float32)
    t1 = t1_ref[...].astype(jnp.float32)
    mx = mix_ref[...].astype(jnp.float32)

    d = mx - t1  # shared term: |mix - e - t1| == |d - e|

    c_inter = jnp.abs(ei - t0) + jnp.abs(d - ei)
    c_intra = jnp.abs(ea - t0) + jnp.abs(d - ea)

    # In-step partial reduce to one vreg-shaped accumulator per loss.
    # rows_tile % 8 == 0, so this reshape only regroups whole (8,128) tiles.
    acc_inter_ref[...] += c_inter.reshape(-1, 8, 128).sum(axis=0)
    acc_intra_ref[...] += c_intra.reshape(-1, 8, 128).sum(axis=0)

    @pl.when(r == pl.num_programs(1) - 1)
    def _():
        out_ref[0, 0] = jnp.sum(acc_inter_ref[...])
        out_ref[0, 1] = jnp.sum(acc_intra_ref[...])


def _plan_tiling(B, T, max_block_bytes=2 * 1024 * 1024):
    """Returns (P, blocks_per_core, rows_tile, T_pad).

    Blocks are (B, rows_tile, 128) in the input dtype (budgeted as f32);
    rows_tile is a multiple of 8.  P=2 gives a leading "parallel" axis so v7x
    can shard across its two TensorCores; on 1-TC chips it just adds one more
    (cheap) serial grid step boundary.
    """
    rows_needed = -(-T // 128)                       # ceil(T / 128)
    rows_cap = max(8, (max_block_bytes // (B * 128 * 4)) // 8 * 8)
    P = 2 if rows_needed >= 16 else 1
    rows_per_core = -(-rows_needed // P)
    rows_tile = min(rows_cap, ((rows_per_core + 7) // 8) * 8)
    blocks_per_core = -(-rows_per_core // rows_tile)
    R = P * blocks_per_core * rows_tile
    return P, blocks_per_core, rows_tile, R * 128


def _fused_l1_sums(est_inter, est_intra, target, mix):
    """Returns a (2,) f32 array: [sum_pair(inter), sum_pair(intra)]
    where sum_pair(e) = sum|e - t0| + sum|mix - e - t1| over all B*T elems."""
    B, _, T = est_inter.shape
    P, bpc, rows_tile, T_pad = _plan_tiling(B, T)
    R = T_pad // 128

    def pad_last(x):
        pad = T_pad - T
        if pad == 0:
            return x
        widths = [(0, 0)] * (x.ndim - 1) + [(0, pad)]
        return jnp.pad(x, widths)  # zero pad -> contributes 0 to both sums

    ei = pad_last(est_inter.reshape(B, T)).reshape(B, R, 128)
    ea = pad_last(est_intra.reshape(B, T)).reshape(B, R, 128)
    tg = pad_last(target).reshape(B, 2, R, 128)
    mx = pad_last(mix).reshape(B, R, 128)

    def row_block(p, r):
        return p * bpc + r

    est_spec = pl.BlockSpec((B, rows_tile, 128),
                            lambda p, r: (0, row_block(p, r), 0))
    mix_spec = pl.BlockSpec((B, rows_tile, 128),
                            lambda p, r: (0, row_block(p, r), 0))
    # target passed twice; the squeezed channel dim is selected by the DMA.
    t0_spec = pl.BlockSpec((B, None, rows_tile, 128),
                           lambda p, r: (0, 0, row_block(p, r), 0))
    t1_spec = pl.BlockSpec((B, None, rows_tile, 128),
                           lambda p, r: (0, 1, row_block(p, r), 0))

    partial = pl.pallas_call(
        _fused_l1_kernel,
        out_shape=jax.ShapeDtypeStruct((P, 2), jnp.float32),
        grid_spec=pltpu.PrefetchScalarGridSpec(
            num_scalar_prefetch=0,
            grid=(P, bpc),
            in_specs=[est_spec, est_spec, t0_spec, t1_spec, mix_spec],
            out_specs=pl.BlockSpec((1, 2), lambda p, r: (p, 0),
                                   memory_space=pltpu.SMEM),
            scratch_shapes=[
                pltpu.VMEM((8, 128), jnp.float32),
                pltpu.VMEM((8, 128), jnp.float32),
            ],
        ),
        compiler_params=pltpu.CompilerParams(
            dimension_semantics=("parallel", "arbitrary"),
            # 5 streams x 2 buffers x <=2 MiB blocks + tiny accumulators
            # ~= 20 MiB live: safe within v7x's 64 MiB physical VMEM and
            # leaves plenty of headroom on v5e/v6e (128 MiB).
            vmem_limit_bytes=40 * 1024 * 1024,
        ),
    )(ei, ea, tg, tg, mx)

    return jnp.sum(partial, axis=0)  # add the per-core partial sums -> (2,)


@jax.jit
def _forward_jit(est_inter, est_intra, target, mix, alpha_1, alpha_2):
    B = est_inter.shape[0]
    T = est_inter.shape[-1]
    sums = _fused_l1_sums(est_inter, est_intra, target, mix)
    n = jnp.float32(B * T)  # mean over the ORIGINAL (unpadded) element count
    loss_inter = alpha_1 * (sums[0] / n)
    loss_intra = alpha_2 * (sums[1] / n)
    return loss_inter + loss_intra, loss_inter, loss_intra


def smoooth_l1_loss_forward(est, target, mix, alpha_1, alpha_2):
    """est: tuple of two [B, 1, T] arrays; target: [B, 2, T]; mix: [B, T].

    Returns (total, loss_inter, loss_intra) as device scalars. The PyTorch
    module calls .item() on the components; do float(...) at the call site if
    host values are needed (kept out of the hot path to avoid blocking syncs).
    """
    est_inter, est_intra = est
    return _forward_jit(est_inter, est_intra, target, mix,
                        jnp.float32(alpha_1), jnp.float32(alpha_2))


if __name__ == "__main__":
    B, T = 2, 256
    alpha_1, alpha_2 = 0.6, 0.4

    key = jax.random.PRNGKey(0)
    k1, k2, k3, k4 = jax.random.split(key, 4)
    est_inter = jax.random.normal(k1, (B, 1, T), dtype=jnp.float32)
    est_intra = jax.random.normal(k2, (B, 1, T), dtype=jnp.float32)
    target = jax.random.normal(k3, (B, 2, T), dtype=jnp.float32)
    mix = jax.random.normal(k4, (B, T), dtype=jnp.float32)

    total, li, la = smoooth_l1_loss_forward(
        (est_inter, est_intra), target, mix, alpha_1, alpha_2
    )
    total = jax.block_until_ready(total)

    # pure-JAX reference check
    def ref_pair(e, t0, t1, m):
        return jnp.mean(jnp.abs(e - t0)) + jnp.mean(jnp.abs(m - e - t1))

    e1 = est_inter[:, 0, :]
    e2 = est_intra[:, 0, :]
    ref_inter = alpha_1 * ref_pair(e1, target[:, 0, :], target[:, 1, :], mix)
    ref_intra = alpha_2 * ref_pair(e2, target[:, 0, :], target[:, 1, :], mix)
    ref_total = ref_inter + ref_intra

    assert jnp.allclose(total, ref_total, rtol=1e-5, atol=1e-5), (total, ref_total)
    assert jnp.allclose(li, ref_inter, rtol=1e-5, atol=1e-5), (li, ref_inter)
    assert jnp.allclose(la, ref_intra, rtol=1e-5, atol=1e-5), (la, ref_intra)

    print("KERNEL_OK")
</pallas_src>

<mosaic_0001>
module attributes {stable_mosaic.version = 11 : i64} {
  func.func @_fused_l1_kernel(%arg0: i32, %arg1: i32, %arg2: memref<2x8x128xf32, #tpu.memory_space<vmem>>, %arg3: memref<2x8x128xf32, #tpu.memory_space<vmem>>, %arg4: memref<2x1x8x128xf32, #tpu.memory_space<vmem>>, %arg5: memref<2x1x8x128xf32, #tpu.memory_space<vmem>>, %arg6: memref<2x8x128xf32, #tpu.memory_space<vmem>>, %arg7: memref<1x2xf32, #tpu.memory_space<smem>>, %arg8: memref<8x128xf32, #tpu.memory_space<vmem>>, %arg9: memref<8x128xf32, #tpu.memory_space<vmem>>) attributes {dimension_semantics = [#tpu.dimension_semantics<parallel>, #tpu.dimension_semantics<arbitrary>], iteration_bounds = array<i64: 1, 1>, scalar_prefetch = 0 : i64, scratch_operands = 2 : i64, tpu.core_type = #tpu.core_type<tc>, window_params = [{transform_indices = @transform_0, window_bounds = array<i64: 2, 8, 128>}, {transform_indices = @transform_1, window_bounds = array<i64: 2, 8, 128>}, {transform_indices = @transform_2, window_bounds = array<i64: 2, 1, 8, 128>}, {transform_indices = @transform_3, window_bounds = array<i64: 2, 1, 8, 128>}, {transform_indices = @transform_4, window_bounds = array<i64: 2, 8, 128>}, {transform_indices = @transform_5, window_bounds = array<i64: 1, 2>}]} {
    %c0_i32 = arith.constant 0 : i32
    %0 = arith.cmpi eq, %arg1, %c0_i32 : i32
    %1 = arith.extui %0 : i1 to i32
    %c0_i32_0 = arith.constant 0 : i32
    %2 = arith.cmpi ne, %1, %c0_i32_0 : i32
    scf.if %2 {
      %cst_28 = arith.constant 0.000000e+00 : f32
      %32 = vector.broadcast %cst_28 : f32 to vector<8x128xf32>
      %c0_29 = arith.constant 0 : index
      %c0_30 = arith.constant 0 : index
      %33 = vector.load %arg8[%c0_29, %c0_30] : memref<8x128xf32, #tpu.memory_space<vmem>>, vector<8x128xf32>
      tpu.vector_store %arg8[%c0_29, %c0_30], %32 {strides = array<i32>} : memref<8x128xf32, #tpu.memory_space<vmem>>, vector<8x128xf32>,
      %cst_31 = arith.constant 0.000000e+00 : f32
      %34 = vector.broadcast %cst_31 : f32 to vector<8x128xf32>
      %c0_32 = arith.constant 0 : index
      %c0_33 = arith.constant 0 : index
      %35 = vector.load %arg9[%c0_32, %c0_33] : memref<8x128xf32, #tpu.memory_space<vmem>>, vector<8x128xf32>
      tpu.vector_store %arg9[%c0_32, %c0_33], %34 {strides = array<i32>} : memref<8x128xf32, #tpu.memory_space<vmem>>, vector<8x128xf32>,
    } else {
    }
    %c0 = arith.constant 0 : index
    %c0_1 = arith.constant 0 : index
    %c0_2 = arith.constant 0 : index
    %3 = vector.load %arg2[%c0, %c0_1, %c0_2] : memref<2x8x128xf32, #tpu.memory_space<vmem>>, vector<2x8x128xf32>
    %c0_3 = arith.constant 0 : index
    %c0_4 = arith.constant 0 : index
    %c0_5 = arith.constant 0 : index
    %4 = vector.load %arg3[%c0_3, %c0_4, %c0_5] : memref<2x8x128xf32, #tpu.memory_space<vmem>>, vector<2x8x128xf32>
    %c0_6 = arith.constant 0 : index
    %c0_7 = arith.constant 0 : index
    %c0_8 = arith.constant 0 : index
    %c0_9 = arith.constant 0 : index
    %5 = vector.load %arg4[%c0_6, %c0_7, %c0_8, %c0_9] : memref<2x1x8x128xf32, #tpu.memory_space<vmem>>, vector<2x1x8x128xf32>
    %6 = vector.shape_cast %5 : vector<2x1x8x128xf32> to vector<2x8x128xf32>
    %c0_10 = arith.constant 0 : index
    %c0_11 = arith.constant 0 : index
    %c0_12 = arith.constant 0 : index
    %c0_13 = arith.constant 0 : index
    %7 = vector.load %arg5[%c0_10, %c0_11, %c0_12, %c0_13] : memref<2x1x8x128xf32, #tpu.memory_space<vmem>>, vector<2x1x8x128xf32>
    %8 = vector.shape_cast %7 : vector<2x1x8x128xf32> to vector<2x8x128xf32>
    %c0_14 = arith.constant 0 : index
    %c0_15 = arith.constant 0 : index
    %c0_16 = arith.constant 0 : index
    %9 = vector.load %arg6[%c0_14, %c0_15, %c0_16] : memref<2x8x128xf32, #tpu.memory_space<vmem>>, vector<2x8x128xf32>
    %10 = arith.subf %9, %8 : vector<2x8x128xf32>
    %11 = arith.subf %3, %6 : vector<2x8x128xf32>
    %12 = math.absf %11 : vector<2x8x128xf32>
    %13 = arith.subf %10, %3 : vector<2x8x128xf32>
    %14 = math.absf %13 : vector<2x8x128xf32>
    %15 = arith.addf %12, %14 : vector<2x8x128xf32>
    %16 = arith.subf %4, %6 : vector<2x8x128xf32>
    %17 = math.absf %16 : vector<2x8x128xf32>
    %18 = arith.subf %10, %4 : vector<2x8x128xf32>
    %19 = math.absf %18 : vector<2x8x128xf32>
    %20 = arith.addf %17, %19 : vector<2x8x128xf32>
    %c0_17 = arith.constant 0 : index
    %c0_18 = arith.constant 0 : index
    %21 = vector.load %arg8[%c0_17, %c0_18] : memref<8x128xf32, #tpu.memory_space<vmem>>, vector<8x128xf32>
    %cst = arith.constant dense<0.000000e+00> : vector<8x128xf32>
    %22 = vector.multi_reduction <add>, %15, %cst [0] : vector<2x8x128xf32> to vector<8x128xf32>
    %23 = arith.addf %21, %22 : vector<8x128xf32>
    %c0_19 = arith.constant 0 : index
    %c0_20 = arith.constant 0 : index
    %24 = vector.load %arg8[%c0_19, %c0_20] : memref<8x128xf32, #tpu.memory_space<vmem>>, vector<8x128xf32>
    tpu.vector_store %arg8[%c0_19, %c0_20], %23 {strides = array<i32>} : memref<8x128xf32, #tpu.memory_space<vmem>>, vector<8x128xf32>,
    %c0_21 = arith.constant 0 : index
    %c0_22 = arith.constant 0 : index
    %25 = vector.load %arg9[%c0_21, %c0_22] : memref<8x128xf32, #tpu.memory_space<vmem>>, vector<8x128xf32>
    %cst_23 = arith.constant dense<0.000000e+00> : vector<8x128xf32>
    %26 = vector.multi_reduction <add>, %20, %cst_23 [0] : vector<2x8x128xf32> to vector<8x128xf32>
    %27 = arith.addf %25, %26 : vector<8x128xf32>
    %c0_24 = arith.constant 0 : index
    %c0_25 = arith.constant 0 : index
    %28 = vector.load %arg9[%c0_24, %c0_25] : memref<8x128xf32, #tpu.memory_space<vmem>>, vector<8x128xf32>
    tpu.vector_store %arg9[%c0_24, %c0_25], %27 {strides = array<i32>} : memref<8x128xf32, #tpu.memory_space<vmem>>, vector<8x128xf32>,
    %c0_i32_26 = arith.constant 0 : i32
    %29 = arith.cmpi eq, %arg1, %c0_i32_26 : i32
    %30 = arith.extui %29 : i1 to i32
    %c0_i32_27 = arith.constant 0 : i32
    %31 = arith.cmpi ne, %30, %c0_i32_27 : i32
    scf.if %31 {
      %c0_28 = arith.constant 0 : index
      %c0_29 = arith.constant 0 : index
      %32 = vector.load %arg8[%c0_28, %c0_29] : memref<8x128xf32, #tpu.memory_space<vmem>>, vector<8x128xf32>
      %33 = vector.shape_cast %32 : vector<8x128xf32> to vector<1x8x128xf32>
      %cst_30 = arith.constant dense<0.000000e+00> : vector<1xf32>
      %34 = vector.multi_reduction <add>, %33, %cst_30 [1, 2] : vector<1x8x128xf32> to vector<1xf32>
      %35 = vector.shape_cast %34 : vector<1xf32> to vector<1x1x1xf32>
      %36 = vector.extract %35[0, 0, 0] : f32 from vector<1x1x1xf32>
      %c0_31 = arith.constant 0 : index
      %c0_32 = arith.constant 0 : index
      %37 = memref.load %arg7[%c0_31, %c0_32] : memref<1x2xf32, #tpu.memory_space<smem>>
      memref.store %36, %arg7[%c0_31, %c0_32] : memref<1x2xf32, #tpu.memory_space<smem>>
      %c0_33 = arith.constant 0 : index
      %c0_34 = arith.constant 0 : index
      %38 = vector.load %arg9[%c0_33, %c0_34] : memref<8x128xf32, #tpu.memory_space<vmem>>, vector<8x128xf32>
      %39 = vector.shape_cast %38 : vector<8x128xf32> to vector<1x8x128xf32>
      %cst_35 = arith.constant dense<0.000000e+00> : vector<1xf32>
      %40 = vector.multi_reduction <add>, %39, %cst_35 [1, 2] : vector<1x8x128xf32> to vector<1xf32>
      %41 = vector.shape_cast %40 : vector<1xf32> to vector<1x1x1xf32>
      %42 = vector.extract %41[0, 0, 0] : f32 from vector<1x1x1xf32>
      %c0_36 = arith.constant 0 : index
      %c1 = arith.constant 1 : index
      %43 = memref.load %arg7[%c0_36, %c1] : memref<1x2xf32, #tpu.memory_space<smem>>
      memref.store %42, %arg7[%c0_36, %c1] : memref<1x2xf32, #tpu.memory_space<smem>>
    } else {
    }
    return
  }
  func.func @transform_0(%arg0: i32, %arg1: i32) -> (i32, i32, i32) {
    %c1_i32 = arith.constant 1 : i32
    %0 = arith.muli %arg0, %c1_i32 : i32
    %1 = arith.addi %0, %arg1 : i32
    %c0_i32 = arith.constant 0 : i32
    %c0_i32_0 = arith.constant 0 : i32
    %c0_i32_1 = arith.constant 0 : i32
    return %c0_i32, %1, %c0_i32_0 : i32, i32, i32
  }
  func.func @transform_1(%arg0: i32, %arg1: i32) -> (i32, i32, i32) {
    %c1_i32 = arith.constant 1 : i32
    %0 = arith.muli %arg0, %c1_i32 : i32
    %1 = arith.addi %0, %arg1 : i32
    %c0_i32 = arith.constant 0 : i32
    %c0_i32_0 = arith.constant 0 : i32
    %c0_i32_1 = arith.constant 0 : i32
    return %c0_i32, %1, %c0_i32_0 : i32, i32, i32
  }
  func.func @transform_2(%arg0: i32, %arg1: i32) -> (i32, i32, i32, i32) {
    %c1_i32 = arith.constant 1 : i32
    %0 = arith.muli %arg0, %c1_i32 : i32
    %1 = arith.addi %0, %arg1 : i32
    %c0_i32 = arith.constant 0 : i32
    %c0_i32_0 = arith.constant 0 : i32
    %c0_i32_1 = arith.constant 0 : i32
    %c0_i32_2 = arith.constant 0 : i32
    return %c0_i32, %c0_i32_0, %1, %c0_i32_1 : i32, i32, i32, i32
  }
  func.func @transform_3(%arg0: i32, %arg1: i32) -> (i32, i32, i32, i32) {
    %c1_i32 = arith.constant 1 : i32
    %0 = arith.muli %arg0, %c1_i32 : i32
    %1 = arith.addi %0, %arg1 : i32
    %c0_i32 = arith.constant 0 : i32
    %c1_i32_0 = arith.constant 1 : i32
    %c0_i32_1 = arith.constant 0 : i32
    %c0_i32_2 = arith.constant 0 : i32
    return %c0_i32, %c1_i32_0, %1, %c0_i32_1 : i32, i32, i32, i32
  }
  func.func @transform_4(%arg0: i32, %arg1: i32) -> (i32, i32, i32) {
    %c1_i32 = arith.constant 1 : i32
    %0 = arith.muli %arg0, %c1_i32 : i32
    %1 = arith.addi %0, %arg1 : i32
    %c0_i32 = arith.constant 0 : i32
    %c0_i32_0 = arith.constant 0 : i32
    %c0_i32_1 = arith.constant 0 : i32
    return %c0_i32, %1, %c0_i32_0 : i32, i32, i32
  }
  func.func @transform_5(%arg0: i32, %arg1: i32) -> (i32, i32) {
    %c0_i32 = arith.constant 0 : i32
    %c0_i32_0 = arith.constant 0 : i32
    return %arg0, %c0_i32 : i32, i32
  }
}

</mosaic_0001>

<llo_original>
// kernel: _forward_jit.1
$region0: #{_forward_jit.1}
  #allocation0 [shape = 'u32[]', space=smem, size = 0x4, offset = 0x4, fixed_abs, tag = 'smem constant byte address 0x4 - core index']
  #allocation1 [shape = 'u32[144,128]{1,0:T(1,128)}', space=vmem, size = 0x12000, scoped, tag = 'internal scratch']
  #allocation2 [shape = 'f32[8,128]{1,0:T(8,128)}', space=vmem, size = 0x1000, scoped, tag = 'scratch operand']
  #allocation3 [shape = 'f32[8,128]{1,0:T(8,128)}', space=vmem, size = 0x1000, scoped, tag = 'scratch operand']
  %s0 = inlined_call_operand.vmem [shape: f32[2,8,128], index: 0, kind: input, shape index: {}]
  %s1 = inlined_call_operand.vmem [shape: f32[2,8,128], index: 1, kind: input, shape index: {}]
  %s2 = inlined_call_operand.vmem [shape: f32[2,2,8,128], index: 2, kind: input, shape index: {}, may-alias: {2,3}]
  %s3 = inlined_call_operand.vmem [shape: f32[2,2,8,128], index: 3, kind: input, shape index: {}, may-alias: {2,3}]
  %s4 = inlined_call_operand.vmem [shape: f32[2,8,128], index: 4, kind: input, shape index: {}]
  %s5 = inlined_call_operand.vmem [shape: f32[1,2], index: 5, kind: output, shape index: {}]
  %s6 = sld [smem:[#allocation0]]
  $region114: #{_forward_jit.1} parent=0
    _
  %s8 = ssub.s32 1, %s6
  %s9 = scalar_select 0, %s8, %s6
  $region1: #{_forward_jit.1} parent=0
    #allocation4 [shape = 'u8[8192]{0}', space=vmem, size = 0x2000, scoped, tag = 'input window, operand 2, single buffered']
    #allocation5 [shape = 'u8[8192]{0}', space=vmem, size = 0x2000, scoped, tag = 'input window, operand 3, single buffered']
    #allocation6 [shape = 'u8[512]{0}', space=smem, size = 0x200, scoped, tag = 'output window, operand 0, single buffered']
    #allocation7 [shape = 's32[1]{0}', space=sflag, size = 0x4, scoped, tag = 'scoped memory for _forward_jit.1']
    %10 = vsyncpa [#allocation7], 0
    // Predicated region
    $region2: #{_forward_jit.1} parent=1 // pred_check
      _
    $region3: #{_forward_jit.1} parent=1 // pred_check_branch
      %12 = sbr.rel (0) target = $region5
    $region4: #{_forward_jit.1} parent=1 // pred_region
      %s13 = sadd.s32 0, 0
      %p14 = scmp.lt.s32.totalorder %s13, 0
      %s15 = scalar_select %p14, %s13, 0
      %s16 = smul.addr %s15, 8
      %s17 = scalar_lea.vmem %s0, %s16
      %s18 = sadd.s32 0, 0
    $region5: #{_forward_jit.1} parent=1 // pred_fallthru
      _
    // Predicated region
    $region6: #{_forward_jit.1} parent=1 // pred_check
      _
    $region7: #{_forward_jit.1} parent=1 // pred_check_branch
      %20 = sbr.rel (0) target = $region9
    $region8: #{_forward_jit.1} parent=1 // pred_region
      %s21 = sadd.s32 0, 0
      %p22 = scmp.lt.s32.totalorder %s21, 0
      %s23 = scalar_select %p22, %s21, 0
      %s24 = smul.addr %s23, 8
      %s25 = scalar_lea.vmem %s1, %s24
      %s26 = sadd.s32 0, 0
    $region9: #{_forward_jit.1} parent=1 // pred_fallthru
      _
    // Predicated region
    $region10: #{_forward_jit.1} parent=1 // pred_check
      _
    $region11: #{_forward_jit.1} parent=1 // pred_check_branch
      %28 = sbr.rel (0) target = $region13
    $region12: #{_forward_jit.1} parent=1 // pred_region
      %s29 = sadd.s32 0, 0
      %s30 = smul.addr %s29, 8
      %s31 = scalar_lea.vmem %s2, %s30
      // Predicated region
      $region14: #{_forward_jit.1} parent=12 // pred_check
        _
      $region15: #{_forward_jit.1} parent=12 // pred_check_branch
        %33 = sbr.rel (0) target = $region17
      $region16: #{_forward_jit.1} parent=12 // pred_region
        // Predicated region
        $region18: #{_forward_jit.1} parent=16 // pred_check
          _
        $region19: #{_forward_jit.1} parent=16 // pred_check_branch
          %35 = sbr.rel (0) target = $region21
        $region20: #{_forward_jit.1} parent=16 // pred_region
          // Predicated region
          $region33: #{_forward_jit.1} parent=20 // pred_check
            _
          $region34: #{_forward_jit.1} parent=20 // pred_check_branch
            %52 = sbr.rel (0) target = $region36
          $region35: #{_forward_jit.1} parent=20 // pred_region
            loop: start=0, step=1, limit=1
            $region37: #{_forward_jit.1} parent=35 // loop_pre_header
              _
            $region38: #{_forward_jit.1} parent=35 // loop_header
              %s54 = sphi 0, %s58
              %p55 = scmp.ge.s32.totalorder %s54, 1
              %s59 = sphi %s31, %s31
              %s60 = sphi [#allocation4], [#allocation4]
            $region39: #{_forward_jit.1} parent=35 // loop_header_branch
              %57 = sbr.rel (%p55) target = $region43
            $region40: #{_forward_jit.1} parent=35 // loop_body
              %v61 = vld [vmem:[%s59] sm:$0xff]
              %62 = vst [vmem:[%s60] sm:$0xff] %v61
              %v63 = vld [vmem:[%s59 + $0x10] sm:$0xff]
              %64 = vst [vmem:[%s60 + $0x8] sm:$0xff] %v63
            $region41: #{_forward_jit.1} parent=35 // loop_footer
              %s58 = sadd.s32 1, %s54
            $region42: #{_forward_jit.1} parent=35 // loop_footer_branch
              %53 = sbr.rel target = $region38
            $region43: #{_forward_jit.1} parent=35 // loop_exit
              _
          $region36: #{_forward_jit.1} parent=20 // pred_fallthru
            _
          // Predicated region
          $region44: #{_forward_jit.1} parent=20 // pred_check
            _
          $region45: #{_forward_jit.1} parent=20 // pred_check_branch
            %66 = sbr.rel target = $region47
          $region46: #{_forward_jit.1} parent=20 // pred_region
            _
          $region47: #{_forward_jit.1} parent=20 // pred_fallthru
            _
        $region21: #{_forward_jit.1} parent=16 // pred_fallthru
          _
        // Predicated region
        $region22: #{_forward_jit.1} parent=16 // pred_check
          _
        $region23: #{_forward_jit.1} parent=16 // pred_check_branch
          %37 = sbr.rel target = $region25
        $region24: #{_forward_jit.1} parent=16 // pred_region
          loop: start=0, step=1, limit=1
          $region26: #{_forward_jit.1} parent=24 // loop_pre_header
            _
          $region27: #{_forward_jit.1} parent=24 // loop_header
            %s40 = sphi 0, %s44
            %p41 = scmp.ge.s32.totalorder %s40, 1
            %s45 = sphi %s31, %s31
            %s46 = sphi [#allocation4], [#allocation4]
          $region28: #{_forward_jit.1} parent=24 // loop_header_branch
            %43 = sbr.rel (%p41) target = $region32
          $region29: #{_forward_jit.1} parent=24 // loop_body
            %v47 = vld [vmem:[%s45] sm:$0xff]
            %48 = vst [vmem:[%s46] sm:$0xff] %v47
            %v49 = vld [vmem:[%s45 + $0x10] sm:$0xff]
            %50 = vst [vmem:[%s46 + $0x8] sm:$0xff] %v49
          $region30: #{_forward_jit.1} parent=24 // loop_footer
            %s44 = sadd.s32 1, %s40
          $region31: #{_forward_jit.1} parent=24 // loop_footer_branch
            %39 = sbr.rel target = $region27
          $region32: #{_forward_jit.1} parent=24 // loop_exit
            _
        $region25: #{_forward_jit.1} parent=16 // pred_fallthru
          _
      $region17: #{_forward_jit.1} parent=12 // pred_fallthru
        _
      %67 = vnop
    $region13: #{_forward_jit.1} parent=1 // pred_fallthru
      _
    // Predicated region
    $region48: #{_forward_jit.1} parent=1 // pred_check
      _
    $region49: #{_forward_jit.1} parent=1 // pred_check_branch
      %69 = sbr.rel (0) target = $region51
    $region50: #{_forward_jit.1} parent=1 // pred_region
      %s70 = sadd.s32 0, 0
      %s71 = sadd.s32 %s70, 1
      %s72 = smul.addr %s71, 8
      %s73 = scalar_lea.vmem %s3, %s72
      // Predicated region
      $region52: #{_forward_jit.1} parent=50 // pred_check
        _
      $region53: #{_forward_jit.1} parent=50 // pred_check_branch
        %75 = sbr.rel (0) target = $region55
      $region54: #{_forward_jit.1} parent=50 // pred_region
        // Predicated region
        $region56: #{_forward_jit.1} parent=54 // pred_check
          _
        $region57: #{_forward_jit.1} parent=54 // pred_check_branch
          %77 = sbr.rel (0) target = $region59
        $region58: #{_forward_jit.1} parent=54 // pred_region
          // Predicated region
          $region71: #{_forward_jit.1} parent=58 // pred_check
            _
          $region72: #{_forward_jit.1} parent=58 // pred_check_branch
            %94 = sbr.rel (0) target = $region74
          $region73: #{_forward_jit.1} parent=58 // pred_region
            loop: start=0, step=1, limit=1
            $region75: #{_forward_jit.1} parent=73 // loop_pre_header
              _
            $region76: #{_forward_jit.1} parent=73 // loop_header
              %s96 = sphi 0, %s100
              %p97 = scmp.ge.s32.totalorder %s96, 1
              %s101 = sphi %s73, %s73
              %s102 = sphi [#allocation5], [#allocation5]
            $region77: #{_forward_jit.1} parent=73 // loop_header_branch
              %99 = sbr.rel (%p97) target = $region81
            $region78: #{_forward_jit.1} parent=73 // loop_body
              %v103 = vld [vmem:[%s101] sm:$0xff]
              %104 = vst [vmem:[%s102] sm:$0xff] %v103
              %v105 = vld [vmem:[%s101 + $0x10] sm:$0xff]
              %106 = vst [vmem:[%s102 + $0x8] sm:$0xff] %v105
            $region79: #{_forward_jit.1} parent=73 // loop_footer
              %s100 = sadd.s32 1, %s96
            $region80: #{_forward_jit.1} parent=73 // loop_footer_branch
              %95 = sbr.rel target = $region76
            $region81: #{_forward_jit.1} parent=73 // loop_exit
              _
          $region74: #{_forward_jit.1} parent=58 // pred_fallthru
            _
          // Predicated region
          $region82: #{_forward_jit.1} parent=58 // pred_check
            _
          $region83: #{_forward_jit.1} parent=58 // pred_check_branch
            %108 = sbr.rel target = $region85
          $region84: #{_forward_jit.1} parent=58 // pred_region
            _
          $region85: #{_forward_jit.1} parent=58 // pred_fallthru
            _
        $region59: #{_forward_jit.1} parent=54 // pred_fallthru
          _
        // Predicated region
        $region60: #{_forward_jit.1} parent=54 // pred_check
          _
        $region61: #{_forward_jit.1} parent=54 // pred_check_branch
          %79 = sbr.rel target = $region63
        $region62: #{_forward_jit.1} parent=54 // pred_region
          loop: start=0, step=1, limit=1
          $region64: #{_forward_jit.1} parent=62 // loop_pre_header
            _
          $region65: #{_forward_jit.1} parent=62 // loop_header
            %s82 = sphi 0, %s86
            %p83 = scmp.ge.s32.totalorder %s82, 1
            %s87 = sphi %s73, %s73
            %s88 = sphi [#allocation5], [#allocation5]
          $region66: #{_forward_jit.1} parent=62 // loop_header_branch
            %85 = sbr.rel (%p83) target = $region70
          $region67: #{_forward_jit.1} parent=62 // loop_body
            %v89 = vld [vmem:[%s87] sm:$0xff]
            %90 = vst [vmem:[%s88] sm:$0xff] %v89
            %v91 = vld [vmem:[%s87 + $0x10] sm:$0xff]
            %92 = vst [vmem:[%s88 + $0x8] sm:$0xff] %v91
          $region68: #{_forward_jit.1} parent=62 // loop_footer
            %s86 = sadd.s32 1, %s82
          $region69: #{_forward_jit.1} parent=62 // loop_footer_branch
            %81 = sbr.rel target = $region65
          $region70: #{_forward_jit.1} parent=62 // loop_exit
            _
        $region63: #{_forward_jit.1} parent=54 // pred_fallthru
          _
      $region55: #{_forward_jit.1} parent=50 // pred_fallthru
        _
      %109 = vnop
    $region51: #{_forward_jit.1} parent=1 // pred_fallthru
      _
    // Predicated region
    $region86: #{_forward_jit.1} parent=1 // pred_check
      _
    $region87: #{_forward_jit.1} parent=1 // pred_check_branch
      %111 = sbr.rel (0) target = $region89
    $region88: #{_forward_jit.1} parent=1 // pred_region
      %s112 = sadd.s32 0, 0
      %p113 = scmp.lt.s32.totalorder %s112, 0
      %s114 = scalar_select %p113, %s112, 0
      %s115 = smul.addr %s114, 8
      %s116 = scalar_lea.vmem %s4, %s115
      %s117 = sadd.s32 0, 0
    $region89: #{_forward_jit.1} parent=1 // pred_fallthru
      _
    // Predicated region
    $region90: #{_forward_jit.1} parent=1 // pred_check
      _
    $region91: #{_forward_jit.1} parent=1 // pred_check_branch
      %119 = sbr.rel (0) target = $region93
    $region92: #{_forward_jit.1} parent=1 // pred_region
      _
    $region93: #{_forward_jit.1} parent=1 // pred_fallthru
      _
    // Predicated region
    $region94: #{_forward_jit.1} parent=1 // pred_check
      _
    $region95: #{_forward_jit.1} parent=1 // pred_check_branch
      %121 = sbr.rel (0) target = $region97
    $region96: #{_forward_jit.1} parent=1 // pred_region
      _
    $region97: #{_forward_jit.1} parent=1 // pred_fallthru
      _
    %s122 = sadd.s32 0, 0
    %p123 = scmp.lt.s32.totalorder %s122, 0
    %s124 = scalar_select %p123, %s122, 0
    %s125 = smul.addr %s124, 8
    %s126 = scalar_lea.vmem %s0, %s125
    %s127 = sadd.s32 0, 0
    %p128 = scmp.lt.s32.totalorder %s127, 0
    %s129 = scalar_select %p128, %s127, 0
    %s130 = smul.addr %s129, 8
    %s131 = scalar_lea.vmem %s1, %s130
    %s132 = sadd.s32 0, 0
    %p133 = scmp.lt.s32.totalorder %s132, 0
    %s134 = scalar_select %p133, %s132, 0
    %s135 = smul.addr %s134, 8
    %s136 = scalar_lea.vmem %s4, %s135
    %s137 = sadd.s32 0, 0
    %p138 = scmp.lt.s32.totalorder %s137, 0
    %s139 = scalar_select %p138, %s137, 0
    %s140 = smul.addr %s139, 8
    %s141 = scalar_lea.vmem %s0, %s140
    %s142 = sadd.s32 0, 0
    %s143 = sadd.s32 0, 0
    %p144 = scmp.lt.s32.totalorder %s143, 0
    %s145 = scalar_select %p144, %s143, 0
    %s146 = smul.addr %s145, 8
    %s147 = scalar_lea.vmem %s1, %s146
    %s148 = sadd.s32 0, 0
    %s149 = sadd.s32 0, 0
    %s150 = sadd.s32 0, 0
    %s151 = sadd.s32 0, 0
    %p152 = scmp.lt.s32.totalorder %s151, 0
    %s153 = scalar_select %p152, %s151, 0
    %s154 = smul.addr %s153, 8
    %s155 = scalar_lea.vmem %s4, %s154
    %s156 = sadd.s32 0, 0
    %p157 = scmp.eq.s32.totalorder 0, 0
    // Predicated region
    $region98: #{_forward_jit.1} parent=1 // pred_check
      %p158 = pneg %p157
    $region99: #{_forward_jit.1} parent=1 // pred_check_branch
      %160 = sbr.rel (%p158) target = $region101
    $region100: #{_forward_jit.1} parent=1 // pred_region
      %161 = vst [vmem:[#allocation2] sm:$0xff] 0.0
      %162 = vst [vmem:[#allocation3] sm:$0xff] 0.0
    $region101: #{_forward_jit.1} parent=1 // pred_fallthru
      _
    %v163 = vld [vmem:[%s141] sm:$0xff]
    %v164 = vld [vmem:[%s141 + $0x8] sm:$0xff]
    %v165 = vld [vmem:[%s147] sm:$0xff]
    %v166 = vld [vmem:[%s147 + $0x8] sm:$0xff]
    %v167 = vld [vmem:[#allocation4] sm:$0xff]
    %v168 = vld [vmem:[#allocation4 + $0x8] sm:$0xff]
    %v169 = vld [vmem:[#allocation5] sm:$0xff]
    %v170 = vld [vmem:[#allocation5 + $0x8] sm:$0xff]
    %v171 = vld [vmem:[%s155] sm:$0xff]
    %v172 = vld [vmem:[%s155 + $0x8] sm:$0xff]
    %v173 = vsub.f32 %v171, %v169
    %v174 = vsub.f32 %v172, %v170
    %v175 = vsub.f32 %v163, %v167
    %v176 = vsub.f32 %v164, %v168
    %v177 = vand.u32 2147483647, %v175
    %v178 = vand.u32 2147483647, %v176
    %v179 = vsub.f32 %v173, %v163
    %v180 = vsub.f32 %v174, %v164
    %v181 = vand.u32 2147483647, %v179
    %v182 = vand.u32 2147483647, %v180
    %v183 = vadd.f32 %v177, %v181
    %v184 = vadd.f32 %v178, %v182
    %v185 = vsub.f32 %v165, %v167
    %v186 = vsub.f32 %v166, %v168
    %v187 = vand.u32 2147483647, %v185
    %v188 = vand.u32 2147483647, %v186
    %v189 = vsub.f32 %v173, %v165
    %v190 = vsub.f32 %v174, %v166
    %v191 = vand.u32 2147483647, %v189
    %v192 = vand.u32 2147483647, %v190
    %v193 = vadd.f32 %v187, %v191
    %v194 = vadd.f32 %v188, %v192
    %v195 = vld [vmem:[#allocation2] sm:$0xff]
    %v196 = vadd.f32 %v183, %v184
    %v197 = vadd.f32 %v195, %v196
    %198 = vst [vmem:[#allocation2] sm:$0xff] %v197
    %v199 = vld [vmem:[#allocation3] sm:$0xff]
    %v200 = vadd.f32 %v193, %v194
    %v201 = vadd.f32 %v199, %v200
    %202 = vst [vmem:[#allocation3] sm:$0xff] %v201
    // Predicated region
    $region102: #{_forward_jit.1} parent=1 // pred_check
      %p203 = pneg %p157
    $region103: #{_forward_jit.1} parent=1 // pred_check_branch
      %205 = sbr.rel (%p203) target = $region105
    $region104: #{_forward_jit.1} parent=1 // pred_region
      %v206 = vld [vmem:[#allocation2] sm:$0xff]
      %207 = vadd.xlane.f32.xlu0 %v206
      %v208 = vpop.xlane.xlu0 %207
      %v209 = vrot.slane %v208, 4
      %v210 = vadd.f32 %v208, %v209
      %v211 = vrot.slane %v210, 2
      %v212 = vadd.f32 %v210, %v211
      %v213 = vrot.slane %v212, 1
      %v214 = vadd.f32 %v212, %v213
      %s215 = vtos %v214
      %s216 = scalar_lea.smem [#allocation6], 0
      %217 = sst [smem:[%s216]] %s215
      %v218 = vld [vmem:[#allocation3] sm:$0xff]
      %219 = vadd.xlane.f32.xlu0 %v218
      %v220 = vpop.xlane.xlu0 %219
      %v221 = vrot.slane %v220, 4
      %v222 = vadd.f32 %v220, %v221
      %v223 = vrot.slane %v222, 2
      %v224 = vadd.f32 %v222, %v223
      %v225 = vrot.slane %v224, 1
      %v226 = vadd.f32 %v224, %v225
      %s227 = vtos %v226
      %s228 = scalar_lea.smem [#allocation6], 1
      %229 = sst [smem:[%s228]] %s227
    $region105: #{_forward_jit.1} parent=1 // pred_fallthru
      _
    // Predicated region
    $region106: #{_forward_jit.1} parent=1 // pred_check
      _
    $region107: #{_forward_jit.1} parent=1 // pred_check_branch
      %231 = sbr.rel (0) target = $region109
    $region108: #{_forward_jit.1} parent=1 // pred_region
      %s233 = ssub.s32 16, 16
      %234 = vsyncadd [#allocation7], %s233
      %s236 = sshll.u32 %s5, 4
      %s237 = int_to_ptr.vmem [resolvable:$true] %s236
      %239 = dma.smem_to_vmem [#allocation6], 16, %s237, [#allocation7]
    $region109: #{_forward_jit.1} parent=1 // pred_fallthru
      _
    // Predicated region
    $region110: #{_forward_jit.1} parent=1 // pred_check
      _
    $region111: #{_forward_jit.1} parent=1 // pred_check_branch
      %241 = sbr.rel (0) target = $region113
    $region112: #{_forward_jit.1} parent=1 // pred_region
      %242 = dma.done [#allocation7], 16
    $region113: #{_forward_jit.1} parent=1 // pred_fallthru
      _
    %243 = sfence
    %244 = vsyncpa [#allocation7], 1

</llo_original>
